<compile_context>
chip_gen: v6e
topology: v6e:2x2x1
jax: 0.10.0
libtpu: 0.0.40
codegen_flags: <defaults>
</compile_context>

<pallas_src>
import functools
import math

import jax
import jax.numpy as jnp
from jax.experimental import pallas as pl
from jax.experimental.pallas import tpu as pltpu


def _round_up(x, m):
    return ((x + m - 1) // m) * m


def _cdiv(a, b):
    return (a + b - 1) // b


def _masked_conv_kernel(x_cur_ref, x_nxt_ref, w_ref, o_ref, col_ref,
                        *, k, wp, cin_p, tm):
    """One (batch item, M-tile) step of the flat-window convolution.

    x_cur_ref: (Cin_p, TM)        bf16 flat padded activation, current tile
    x_nxt_ref: (Cin_p, TM)        bf16 next tile (supplies the tap halo)
    w_ref:     (Cout, K*K*Cin_p)  bf16 fused (already masked) weights, resident
    o_ref:     (Cout, TM)         output tile (lane-dense, unmasked stores)
    col_ref:   (K*K*Cin_p, TM)    bf16 VMEM im2col scratch
    """
    # Build the im2col stack with K*K statically shifted ref->ref copies.
    # Every store covers whole sublane groups (Cin_p % 8 == 0) and the scratch
    # is fully overwritten each step, so no stale data is ever read.
    for kh in range(k):
        for kw in range(k):
            t = kh * k + kw
            off = kh * wp + kw                 # static lane shift of this tap
            r0 = t * cin_p
            if off == 0:
                col_ref[r0:r0 + cin_p, :] = x_cur_ref[...]
            else:
                col_ref[r0:r0 + cin_p, :tm - off] = x_cur_ref[:, off:]
                col_ref[r0:r0 + cin_p, tm - off:] = x_nxt_ref[:, :off]
    # Single fused MXU matmul: contraction = K*K*Cin_p, f32 accumulation
    # inside the MXU (no per-tap VPU add chain, one weight load per step).
    o_ref[...] = jnp.dot(w_ref[...], col_ref[...],
                         preferred_element_type=jnp.float32).astype(o_ref.dtype)


def masked_convolution_forward(x_nchw, weight_oihw, mask_oihw=None, bias=None,
                               stride=1, padding=1, training=True):
    """Pallas implementation of MaskedConvolution.forward."""
    # TODO(synk): stride != 1 support (module default stride=1 is implemented).
    assert stride == 1, "only stride=1 (module default) is implemented"

    n, cin, h, w = x_nchw.shape
    cout, cin_w, k, k2 = weight_oihw.shape
    assert cin == cin_w and k == k2

    hp, wp = h + 2 * padding, w + 2 * padding
    ho, wo = hp - k + 1, wp - k + 1
    assert ho >= 1 and wo >= 1

    cin_p = _round_up(cin, 8)            # whole-sublane channel groups
    c9 = k * k * cin_p                   # fused contraction length
    halo = (k - 1) * wp + (k - 1)        # furthest static tap shift
    m_item = ho * wp                     # flat output length needed per item

    # M-tile size: multiple of 128 (unmasked lane-dense stores), big enough to
    # hold the tap halo, capped so per-step VMEM stays small even for large
    # Cin (v7x: 64 MiB VMEM), and split so the all-parallel grid has >= 2
    # steps even when N == 1 (v7x has 2 TensorCores).
    tm = 512
    if m_item <= tm:
        want_tiles = 2 if n == 1 else 1
        tm = _round_up(max(_cdiv(m_item, want_tiles), 1), 128)
    tm = max(tm, _round_up(halo + 1, 128))
    n_tiles = _cdiv(m_item, tm)
    l_in = (n_tiles + 1) * tm            # +1 zero tile: "next" halo block is
    m_out = n_tiles * tm                 # always a valid block index

    # ---- glue (plain JAX; activations cross HBM once, mask folded once) ----
    if training and mask_oihw is not None:
        w_eff = weight_oihw * mask_oihw
    else:
        w_eff = weight_oihw
    # (O,I,KH,KW) -> pad I to Cin_p -> (O,KH,KW,I) -> (O, K*K*Cin_p), bf16.
    w_eff = jnp.pad(w_eff, ((0, 0), (0, cin_p - cin), (0, 0), (0, 0)))
    w_fused = jnp.transpose(w_eff, (0, 2, 3, 1)).reshape(cout, c9)
    w_fused = w_fused.astype(jnp.bfloat16)

    # Zero-pad spatial + channel dims, flatten (Hp,Wp) -> Hp*Wp, pad the flat
    # axis out to (n_tiles+1)*TM with zeros.
    x_pad = jnp.pad(x_nchw, ((0, 0), (0, cin_p - cin),
                             (padding, padding), (padding, padding)))
    x_flat = x_pad.reshape(n, cin_p, hp * wp)
    x_flat = jnp.pad(x_flat, ((0, 0), (0, 0), (0, l_in - hp * wp)))
    x_flat = x_flat.astype(jnp.bfloat16)

    out_dtype = x_nchw.dtype
    out_isz = jnp.dtype(out_dtype).itemsize

    # VMEM budget from the actual (double-buffered) block sizes, with headroom.
    step_bytes = (2 * 2 * cin_p * tm * 2      # two input specs, 2 buffers, bf16
                  + 2 * cout * tm * out_isz   # output, 2 buffers
                  + 2 * cout * c9 * 2         # resident fused weights
                  + c9 * tm * 2)              # im2col scratch
    vmem_limit = int(min(100 * 1024 * 1024,
                         max(16 * 1024 * 1024, 4 * step_bytes)))

    cost = pl.CostEstimate(
        flops=2 * n * ho * wo * k * k * cin * cout,
        transcendentals=0,
        bytes_accessed=int(2 * x_flat.size * 2       # cur + halo reads, bf16
                           + w_fused.size * 2
                           + n * cout * m_out * out_isz))

    out_flat = pl.pallas_call(
        functools.partial(_masked_conv_kernel, k=k, wp=wp, cin_p=cin_p, tm=tm),
        out_shape=jax.ShapeDtypeStruct((n, cout, m_out), out_dtype),
        grid_spec=pltpu.PrefetchScalarGridSpec(
            num_scalar_prefetch=0,
            grid=(n, n_tiles),
            in_specs=[
                pl.BlockSpec((None, cin_p, tm), lambda b, m: (b, 0, m)),      # cur
                pl.BlockSpec((None, cin_p, tm), lambda b, m: (b, 0, m + 1)),  # halo
                pl.BlockSpec((cout, c9), lambda b, m: (0, 0)),                # weights
            ],
            out_specs=pl.BlockSpec((None, cout, tm), lambda b, m: (b, 0, m)),
            scratch_shapes=[pltpu.VMEM((c9, tm), jnp.bfloat16)],
        ),
        compiler_params=pltpu.CompilerParams(
            dimension_semantics=("parallel", "parallel"),
            vmem_limit_bytes=vmem_limit),
        cost_estimate=cost,
    )(x_flat, x_flat, w_fused)

    # (N, Cout, n_tiles*TM) -> crop junk rows / wrapped junk columns -> NCHW.
    # Single fused slice copy; never expose out_flat uncropped.
    out = out_flat[:, :, :m_item].reshape(n, cout, ho, wp)[..., :wo]
    if bias is not None:
        # TODO(synk): fold the bias add into the kernel matmul epilogue.
        out = out + bias.reshape(1, cout, 1, 1).astype(out.dtype)
    return out


if __name__ == "__main__":
    # Module config (defaults): kernel_size=3, padding=1, stride=1, bias=False.
    in_channels, out_channels, ksize, pad, stride = 4, 8, 3, 1, 1
    N, H, W = 2, 16, 16

    key = jax.random.PRNGKey(0)
    kx, kw_key = jax.random.split(key)

    # reset_params(): weight ~ U(-stdv, stdv), stdv = 1/sqrt(in_channels)
    stdv = 1.0 / math.sqrt(in_channels)
    weight = jax.random.uniform(
        kw_key, (out_channels, in_channels, ksize, ksize),
        minval=-stdv, maxval=stdv, dtype=jnp.float32)
    # Non-trivial pruning mask (as MaskedConvolution.prune would produce).
    mask = (jnp.abs(weight) >= 0.15).astype(jnp.float32)

    x = jax.random.normal(kx, (N, in_channels, H, W), dtype=jnp.float32)

    # --- training path: conv with weight * mask ---
    out = masked_convolution_forward(x, weight, mask,
                                     stride=stride, padding=pad, training=True)
    out = jax.block_until_ready(out)
    assert out.shape == (N, out_channels, H, W), out.shape

    ref = jax.lax.conv_general_dilated(
        x, weight * mask,
        window_strides=(stride, stride),
        padding=[(pad, pad), (pad, pad)],
        dimension_numbers=("NCHW", "OIHW", "NCHW"),
        precision=jax.lax.Precision.HIGHEST)
    ref = jax.block_until_ready(ref)
    # bf16 MXU operands with f32 accumulation -> 2e-2 tolerance.
    assert jnp.allclose(out, ref, rtol=2e-2, atol=2e-2), float(
        jnp.max(jnp.abs(out - ref)))

    # --- eval path: plain conv, mask=None guard exercised ---
    out_eval = masked_convolution_forward(x, weight, None,
                                          stride=stride, padding=pad,
                                          training=False)
    out_eval = jax.block_until_ready(out_eval)
    ref_eval = jax.lax.conv_general_dilated(
        x, weight,
        window_strides=(stride, stride),
        padding=[(pad, pad), (pad, pad)],
        dimension_numbers=("NCHW", "OIHW", "NCHW"),
        precision=jax.lax.Precision.HIGHEST)
    ref_eval = jax.block_until_ready(ref_eval)
    assert jnp.allclose(out_eval, ref_eval, rtol=2e-2, atol=2e-2), float(
        jnp.max(jnp.abs(out_eval - ref_eval)))

    print("KERNEL_OK")
</pallas_src>

<mosaic_0001>
module attributes {stable_mosaic.version = 11 : i64} {
  func.func @_masked_conv_kernel(%arg0: i32, %arg1: i32, %arg2: memref<1x8x384xbf16, #tpu.memory_space<vmem>>, %arg3: memref<1x8x384xbf16, #tpu.memory_space<vmem>>, %arg4: memref<8x72xbf16, #tpu.memory_space<vmem>>, %arg5: memref<1x8x384xf32, #tpu.memory_space<vmem>>, %arg6: memref<72x384xbf16, #tpu.memory_space<vmem>>) attributes {dimension_semantics = [#tpu.dimension_semantics<parallel>, #tpu.dimension_semantics<parallel>], iteration_bounds = array<i64: 2, 1>, scalar_prefetch = 0 : i64, scratch_operands = 1 : i64, tpu.core_type = #tpu.core_type<tc>, window_params = [{transform_indices = @transform_0, window_bounds = array<i64: 1, 8, 384>}, {transform_indices = @transform_1, window_bounds = array<i64: 1, 8, 384>}, {pipeline_mode = #tpu.pipeline_mode<synchronous>, transform_indices = @transform_2, window_bounds = array<i64: 8, 72>}, {transform_indices = @transform_3, window_bounds = array<i64: 1, 8, 384>}]} {
    %c0 = arith.constant 0 : index
    %c0_0 = arith.constant 0 : index
    %c0_1 = arith.constant 0 : index
    %0 = vector.load %arg2[%c0, %c0_0, %c0_1] : memref<1x8x384xbf16, #tpu.memory_space<vmem>>, vector<1x8x384xbf16>
    %1 = vector.shape_cast %0 : vector<1x8x384xbf16> to vector<8x384xbf16>
    %c0_2 = arith.constant 0 : index
    %c0_3 = arith.constant 0 : index
    %2 = vector.load %arg6[%c0_2, %c0_3] : memref<72x384xbf16, #tpu.memory_space<vmem>>, vector<8x384xbf16>
    tpu.vector_store %arg6[%c0_2, %c0_3], %1 {strides = array<i32>} : memref<72x384xbf16, #tpu.memory_space<vmem>>, vector<8x384xbf16>,
    %c0_4 = arith.constant 0 : index
    %c0_5 = arith.constant 0 : index
    %c1 = arith.constant 1 : index
    %3 = vector.load %arg2[%c0_4, %c0_5, %c1] : memref<1x8x384xbf16, #tpu.memory_space<vmem>>, vector<1x8x383xbf16>
    %4 = vector.shape_cast %3 : vector<1x8x383xbf16> to vector<8x383xbf16>
    %c8 = arith.constant 8 : index
    %c0_6 = arith.constant 0 : index
    %5 = vector.load %arg6[%c8, %c0_6] : memref<72x384xbf16, #tpu.memory_space<vmem>>, vector<8x383xbf16>
    tpu.vector_store %arg6[%c8, %c0_6], %4 {strides = array<i32>} : memref<72x384xbf16, #tpu.memory_space<vmem>>, vector<8x383xbf16>,
    %c0_7 = arith.constant 0 : index
    %c0_8 = arith.constant 0 : index
    %c0_9 = arith.constant 0 : index
    %6 = vector.load %arg3[%c0_7, %c0_8, %c0_9] : memref<1x8x384xbf16, #tpu.memory_space<vmem>>, vector<1x8x1xbf16>
    %7 = vector.shape_cast %6 : vector<1x8x1xbf16> to vector<8x1xbf16>
    %c8_10 = arith.constant 8 : index
    %c383 = arith.constant 383 : index
    %8 = vector.load %arg6[%c8_10, %c383] : memref<72x384xbf16, #tpu.memory_space<vmem>>, vector<8x1xbf16>
    tpu.vector_store %arg6[%c8_10, %c383], %7 {strides = array<i32>} : memref<72x384xbf16, #tpu.memory_space<vmem>>, vector<8x1xbf16>,
    %c0_11 = arith.constant 0 : index
    %c0_12 = arith.constant 0 : index
    %c2 = arith.constant 2 : index
    %9 = vector.load %arg2[%c0_11, %c0_12, %c2] : memref<1x8x384xbf16, #tpu.memory_space<vmem>>, vector<1x8x382xbf16>
    %10 = vector.shape_cast %9 : vector<1x8x382xbf16> to vector<8x382xbf16>
    %c16 = arith.constant 16 : index
    %c0_13 = arith.constant 0 : index
    %11 = vector.load %arg6[%c16, %c0_13] : memref<72x384xbf16, #tpu.memory_space<vmem>>, vector<8x382xbf16>
    tpu.vector_store %arg6[%c16, %c0_13], %10 {strides = array<i32>} : memref<72x384xbf16, #tpu.memory_space<vmem>>, vector<8x382xbf16>,
    %c0_14 = arith.constant 0 : index
    %c0_15 = arith.constant 0 : index
    %c0_16 = arith.constant 0 : index
    %12 = vector.load %arg3[%c0_14, %c0_15, %c0_16] : memref<1x8x384xbf16, #tpu.memory_space<vmem>>, vector<1x8x2xbf16>
    %13 = vector.shape_cast %12 : vector<1x8x2xbf16> to vector<8x2xbf16>
    %c16_17 = arith.constant 16 : index
    %c382 = arith.constant 382 : index
    %14 = vector.load %arg6[%c16_17, %c382] : memref<72x384xbf16, #tpu.memory_space<vmem>>, vector<8x2xbf16>
    tpu.vector_store %arg6[%c16_17, %c382], %13 {strides = array<i32>} : memref<72x384xbf16, #tpu.memory_space<vmem>>, vector<8x2xbf16>,
    %c0_18 = arith.constant 0 : index
    %c0_19 = arith.constant 0 : index
    %c18 = arith.constant 18 : index
    %15 = vector.load %arg2[%c0_18, %c0_19, %c18] : memref<1x8x384xbf16, #tpu.memory_space<vmem>>, vector<1x8x366xbf16>
    %16 = vector.shape_cast %15 : vector<1x8x366xbf16> to vector<8x366xbf16>
    %c24 = arith.constant 24 : index
    %c0_20 = arith.constant 0 : index
    %17 = vector.load %arg6[%c24, %c0_20] : memref<72x384xbf16, #tpu.memory_space<vmem>>, vector<8x366xbf16>
    tpu.vector_store %arg6[%c24, %c0_20], %16 {strides = array<i32>} : memref<72x384xbf16, #tpu.memory_space<vmem>>, vector<8x366xbf16>,
    %c0_21 = arith.constant 0 : index
    %c0_22 = arith.constant 0 : index
    %c0_23 = arith.constant 0 : index
    %18 = vector.load %arg3[%c0_21, %c0_22, %c0_23] : memref<1x8x384xbf16, #tpu.memory_space<vmem>>, vector<1x8x18xbf16>
    %19 = vector.shape_cast %18 : vector<1x8x18xbf16> to vector<8x18xbf16>
    %c24_24 = arith.constant 24 : index
    %c366 = arith.constant 366 : index
    %20 = vector.load %arg6[%c24_24, %c366] : memref<72x384xbf16, #tpu.memory_space<vmem>>, vector<8x18xbf16>
    tpu.vector_store %arg6[%c24_24, %c366], %19 {strides = array<i32>} : memref<72x384xbf16, #tpu.memory_space<vmem>>, vector<8x18xbf16>,
    %c0_25 = arith.constant 0 : index
    %c0_26 = arith.constant 0 : index
    %c19 = arith.constant 19 : index
    %21 = vector.load %arg2[%c0_25, %c0_26, %c19] : memref<1x8x384xbf16, #tpu.memory_space<vmem>>, vector<1x8x365xbf16>
    %22 = vector.shape_cast %21 : vector<1x8x365xbf16> to vector<8x365xbf16>
    %c32 = arith.constant 32 : index
    %c0_27 = arith.constant 0 : index
    %23 = vector.load %arg6[%c32, %c0_27] : memref<72x384xbf16, #tpu.memory_space<vmem>>, vector<8x365xbf16>
    tpu.vector_store %arg6[%c32, %c0_27], %22 {strides = array<i32>} : memref<72x384xbf16, #tpu.memory_space<vmem>>, vector<8x365xbf16>,
    %c0_28 = arith.constant 0 : index
    %c0_29 = arith.constant 0 : index
    %c0_30 = arith.constant 0 : index
    %24 = vector.load %arg3[%c0_28, %c0_29, %c0_30] : memref<1x8x384xbf16, #tpu.memory_space<vmem>>, vector<1x8x19xbf16>
    %25 = vector.shape_cast %24 : vector<1x8x19xbf16> to vector<8x19xbf16>
    %c32_31 = arith.constant 32 : index
    %c365 = arith.constant 365 : index
    %26 = vector.load %arg6[%c32_31, %c365] : memref<72x384xbf16, #tpu.memory_space<vmem>>, vector<8x19xbf16>
    tpu.vector_store %arg6[%c32_31, %c365], %25 {strides = array<i32>} : memref<72x384xbf16, #tpu.memory_space<vmem>>, vector<8x19xbf16>,
    %c0_32 = arith.constant 0 : index
    %c0_33 = arith.constant 0 : index
    %c20 = arith.constant 20 : index
    %27 = vector.load %arg2[%c0_32, %c0_33, %c20] : memref<1x8x384xbf16, #tpu.memory_space<vmem>>, vector<1x8x364xbf16>
    %28 = vector.shape_cast %27 : vector<1x8x364xbf16> to vector<8x364xbf16>
    %c40 = arith.constant 40 : index
    %c0_34 = arith.constant 0 : index
    %29 = vector.load %arg6[%c40, %c0_34] : memref<72x384xbf16, #tpu.memory_space<vmem>>, vector<8x364xbf16>
    tpu.vector_store %arg6[%c40, %c0_34], %28 {strides = array<i32>} : memref<72x384xbf16, #tpu.memory_space<vmem>>, vector<8x364xbf16>,
    %c0_35 = arith.constant 0 : index
    %c0_36 = arith.constant 0 : index
    %c0_37 = arith.constant 0 : index
    %30 = vector.load %arg3[%c0_35, %c0_36, %c0_37] : memref<1x8x384xbf16, #tpu.memory_space<vmem>>, vector<1x8x20xbf16>
    %31 = vector.shape_cast %30 : vector<1x8x20xbf16> to vector<8x20xbf16>
    %c40_38 = arith.constant 40 : index
    %c364 = arith.constant 364 : index
    %32 = vector.load %arg6[%c40_38, %c364] : memref<72x384xbf16, #tpu.memory_space<vmem>>, vector<8x20xbf16>
    tpu.vector_store %arg6[%c40_38, %c364], %31 {strides = array<i32>} : memref<72x384xbf16, #tpu.memory_space<vmem>>, vector<8x20xbf16>,
    %c0_39 = arith.constant 0 : index
    %c0_40 = arith.constant 0 : index
    %c36 = arith.constant 36 : index
    %33 = vector.load %arg2[%c0_39, %c0_40, %c36] : memref<1x8x384xbf16, #tpu.memory_space<vmem>>, vector<1x8x348xbf16>
    %34 = vector.shape_cast %33 : vector<1x8x348xbf16> to vector<8x348xbf16>
    %c48 = arith.constant 48 : index
    %c0_41 = arith.constant 0 : index
    %35 = vector.load %arg6[%c48, %c0_41] : memref<72x384xbf16, #tpu.memory_space<vmem>>, vector<8x348xbf16>
    tpu.vector_store %arg6[%c48, %c0_41], %34 {strides = array<i32>} : memref<72x384xbf16, #tpu.memory_space<vmem>>, vector<8x348xbf16>,
    %c0_42 = arith.constant 0 : index
    %c0_43 = arith.constant 0 : index
    %c0_44 = arith.constant 0 : index
    %36 = vector.load %arg3[%c0_42, %c0_43, %c0_44] : memref<1x8x384xbf16, #tpu.memory_space<vmem>>, vector<1x8x36xbf16>
    %37 = vector.shape_cast %36 : vector<1x8x36xbf16> to vector<8x36xbf16>
    %c48_45 = arith.constant 48 : index
    %c348 = arith.constant 348 : index
    %38 = vector.load %arg6[%c48_45, %c348] : memref<72x384xbf16, #tpu.memory_space<vmem>>, vector<8x36xbf16>
    tpu.vector_store %arg6[%c48_45, %c348], %37 {strides = array<i32>} : memref<72x384xbf16, #tpu.memory_space<vmem>>, vector<8x36xbf16>,
    %c0_46 = arith.constant 0 : index
    %c0_47 = arith.constant 0 : index
    %c37 = arith.constant 37 : index
    %39 = vector.load %arg2[%c0_46, %c0_47, %c37] : memref<1x8x384xbf16, #tpu.memory_space<vmem>>, vector<1x8x347xbf16>
    %40 = vector.shape_cast %39 : vector<1x8x347xbf16> to vector<8x347xbf16>
    %c56 = arith.constant 56 : index
    %c0_48 = arith.constant 0 : index
    %41 = vector.load %arg6[%c56, %c0_48] : memref<72x384xbf16, #tpu.memory_space<vmem>>, vector<8x347xbf16>
    tpu.vector_store %arg6[%c56, %c0_48], %40 {strides = array<i32>} : memref<72x384xbf16, #tpu.memory_space<vmem>>, vector<8x347xbf16>,
    %c0_49 = arith.constant 0 : index
    %c0_50 = arith.constant 0 : index
    %c0_51 = arith.constant 0 : index
    %42 = vector.load %arg3[%c0_49, %c0_50, %c0_51] : memref<1x8x384xbf16, #tpu.memory_space<vmem>>, vector<1x8x37xbf16>
    %43 = vector.shape_cast %42 : vector<1x8x37xbf16> to vector<8x37xbf16>
    %c56_52 = arith.constant 56 : index
    %c347 = arith.constant 347 : index
    %44 = vector.load %arg6[%c56_52, %c347] : memref<72x384xbf16, #tpu.memory_space<vmem>>, vector<8x37xbf16>
    tpu.vector_store %arg6[%c56_52, %c347], %43 {strides = array<i32>} : memref<72x384xbf16, #tpu.memory_space<vmem>>, vector<8x37xbf16>,
    %c0_53 = arith.constant 0 : index
    %c0_54 = arith.constant 0 : index
    %c38 = arith.constant 38 : index
    %45 = vector.load %arg2[%c0_53, %c0_54, %c38] : memref<1x8x384xbf16, #tpu.memory_space<vmem>>, vector<1x8x346xbf16>
    %46 = vector.shape_cast %45 : vector<1x8x346xbf16> to vector<8x346xbf16>
    %c64 = arith.constant 64 : index
    %c0_55 = arith.constant 0 : index
    %47 = vector.load %arg6[%c64, %c0_55] : memref<72x384xbf16, #tpu.memory_space<vmem>>, vector<8x346xbf16>
    tpu.vector_store %arg6[%c64, %c0_55], %46 {strides = array<i32>} : memref<72x384xbf16, #tpu.memory_space<vmem>>, vector<8x346xbf16>,
    %c0_56 = arith.constant 0 : index
    %c0_57 = arith.constant 0 : index
    %c0_58 = arith.constant 0 : index
    %48 = vector.load %arg3[%c0_56, %c0_57, %c0_58] : memref<1x8x384xbf16, #tpu.memory_space<vmem>>, vector<1x8x38xbf16>
    %49 = vector.shape_cast %48 : vector<1x8x38xbf16> to vector<8x38xbf16>
    %c64_59 = arith.constant 64 : index
    %c346 = arith.constant 346 : index
    %50 = vector.load %arg6[%c64_59, %c346] : memref<72x384xbf16, #tpu.memory_space<vmem>>, vector<8x38xbf16>
    tpu.vector_store %arg6[%c64_59, %c346], %49 {strides = array<i32>} : memref<72x384xbf16, #tpu.memory_space<vmem>>, vector<8x38xbf16>,
    %c0_60 = arith.constant 0 : index
    %c0_61 = arith.constant 0 : index
    %51 = vector.load %arg4[%c0_60, %c0_61] : memref<8x72xbf16, #tpu.memory_space<vmem>>, vector<8x72xbf16>
    %c0_62 = arith.constant 0 : index
    %c0_63 = arith.constant 0 : index
    %52 = vector.load %arg6[%c0_62, %c0_63] : memref<72x384xbf16, #tpu.memory_space<vmem>>, vector<72x384xbf16>
    %cst = arith.constant dense<0.000000e+00> : vector<8x384xf32>
    %53 = tpu.matmul %51, %52, %cst {dimension_numbers = #tpu.dot_dimension_numbers<[1], [0], [0], [1], [0, 0, 1, 1], [], []>} : vector<8x72xbf16>, vector<72x384xbf16>, vector<8x384xf32> -> vector<8x384xf32>
    %c0_64 = arith.constant 0 : index
    %c0_65 = arith.constant 0 : index
    %c0_66 = arith.constant 0 : index
    %54 = vector.load %arg5[%c0_64, %c0_65, %c0_66] : memref<1x8x384xf32, #tpu.memory_space<vmem>>, vector<1x8x384xf32>
    %55 = vector.shape_cast %54 : vector<1x8x384xf32> to vector<8x384xf32>
    %56 = vector.shape_cast %53 : vector<8x384xf32> to vector<1x8x384xf32>
    tpu.vector_store %arg5[%c0_64, %c0_65, %c0_66], %56 {strides = array<i32>} : memref<1x8x384xf32, #tpu.memory_space<vmem>>, vector<1x8x384xf32>,
    return
  }
  func.func @transform_0(%arg0: i32, %arg1: i32) -> (i32, i32, i32) {
    %c0_i32 = arith.constant 0 : i32
    %c0_i32_0 = arith.constant 0 : i32
    return %arg0, %c0_i32, %arg1 : i32, i32, i32
  }
  func.func @transform_1(%arg0: i32, %arg1: i32) -> (i32, i32, i32) {
    %c1_i32 = arith.constant 1 : i32
    %0 = arith.addi %arg1, %c1_i32 : i32
    %c0_i32 = arith.constant 0 : i32
    %c0_i32_0 = arith.constant 0 : i32
    return %arg0, %c0_i32, %0 : i32, i32, i32
  }
  func.func @transform_2(%arg0: i32, %arg1: i32) -> (i32, i32) {
    %c0_i32 = arith.constant 0 : i32
    %c0_i32_0 = arith.constant 0 : i32
    %c0_i32_1 = arith.constant 0 : i32
    return %c0_i32, %c0_i32_0 : i32, i32
  }
  func.func @transform_3(%arg0: i32, %arg1: i32) -> (i32, i32, i32) {
    %c0_i32 = arith.constant 0 : i32
    %c0_i32_0 = arith.constant 0 : i32
    return %arg0, %c0_i32, %arg1 : i32, i32, i32
  }
}

</mosaic_0001>

<llo_original>
// kernel: tpu_custom_call.1
$region0: #{tpu_custom_call.1}
  #allocation0 [shape = 'u32[]', space=smem, size = 0x4, offset = 0x4, fixed_abs, tag = 'smem constant byte address 0x4 - core index']
  #allocation1 [shape = 'u32[144,128]{1,0:T(1,128)}', space=vmem, size = 0x12000, scoped, tag = 'internal scratch']
  #allocation2 [shape = 'bf16[72,384]{1,0:T(8,128)(2,1)}', space=vmem, size = 0xd800, scoped, tag = 'scratch operand']
  %s0 = inlined_call_operand.hbm [shape: bf16[2,8,768], index: 0, kind: input, shape index: {}]
  %s1 = inlined_call_operand.hbm [shape: bf16[2,8,768], index: 1, kind: input, shape index: {}]
  %s2 = inlined_call_operand.hbm [shape: bf16[8,72], index: 2, kind: input, shape index: {}]
  %s3 = inlined_call_operand.hbm [shape: f32[2,8,384], index: 3, kind: output, shape index: {}]
  %s4 = sld [smem:[#allocation0]]
  $region57: #{tpu_custom_call.1} parent=0
    _
  %s6 = ssub.s32 1, %s4
  %s7 = scalar_select 0, %s6, %s4
  $region1: #{tpu_custom_call.1} parent=0
    #allocation3 [shape = 'u8[12288]{0}', space=vmem, size = 0x3000, scoped, tag = 'input window, operand 0']
    #allocation4 [shape = 's32[2]{0}', space=sflag, size = 0x8, scoped, tag = 'scoped memory for tpu_custom_call.1']
    #allocation5 [shape = 's32[2]{0}', space=sflag, size = 0x8, scoped, tag = 'scoped memory for tpu_custom_call.1']
    #allocation6 [shape = 'u8[12288]{0}', space=vmem, size = 0x3000, scoped, tag = 'input window, operand 1']
    #allocation7 [shape = 's32[2]{0}', space=sflag, size = 0x8, scoped, tag = 'scoped memory for tpu_custom_call.1']
    #allocation8 [shape = 'u8[2048]{0}', space=vmem, size = 0x800, scoped, tag = 'input window, operand 2, single buffered']
    #allocation9 [shape = 'u8[24576]{0}', space=vmem, size = 0x6000, scoped, tag = 'output window, operand 0']
    %8 = vsyncpa [#allocation4], 0
    %s9 = scalar_lea.sflag [#allocation4], 1
    %10 = vsyncpa %s9, 0
    %11 = vsyncpa [#allocation7], 0
    %s12 = scalar_lea.sflag [#allocation7], 1
    %13 = vsyncpa %s12, 0
    %14 = vsyncpa [#allocation5], 0
    %s15 = scalar_lea.sflag [#allocation5], 1
    %16 = vsyncpa %s15, 0
    loop: start=0, step=1, limit=4
    $region2: #{tpu_custom_call.1} parent=1 // loop_pre_header
      _
    $region3: #{tpu_custom_call.1} parent=1 // loop_header
      %s18 = sphi 0, %s22
      %p19 = scmp.ge.s32.totalorder %s18, 4
      %s25 = sphi 0, %s37
      %s26 = sphi 0, %s33
      %s27 = sphi 0, %s25
      %s28 = sphi 0, %s26
      %s29 = sphi 0, %s27
      %s30 = sphi 0, %s28
      %s42 = sphi 0, %s44
      %s45 = sphi 0, %s42
      %s46 = sphi 0, %s45
      %s62 = sphi 0, %s46
      %s72 = sphi 0, %s74
      %s75 = sphi 0, %s72
      %s76 = sphi 0, %s75
      %s92 = sphi 0, %s76
      %s96 = sphi 0, %s96
      %s98 = sphi 0, %s96
      %s99 = sphi 0, %s98
      %s113 = sphi 0, %s99
      %s121 = sphi 0, %s123
      %s124 = sphi 0, %s121
      %s125 = sphi 0, %s124
      %s141 = sphi 0, %s125
    $region4: #{tpu_custom_call.1} parent=1 // loop_header_branch
      %21 = sbr.rel (%p19) target = $region8
    $region5: #{tpu_custom_call.1} parent=1 // loop_body
      %s23 = ssub.s32 %s18, 1
      %s24 = ssub.s32 %s18, 2
      %s31 = sadd.s32 1, %s26
      %p32 = scmp.ge.s32.totalorder %s31, 1
      %s33 = scalar_select %p32, 0, %s31
      %s34 = sadd.s32 1, %s25
      %s35 = scalar_select %p32, %s34, %s25
      %p36 = scmp.ge.s32.totalorder %s35, 2
      %s37 = scalar_select %p36, 0, %s35
      %s38 = ssub.s32 %s25, %s37
      %s39 = ssub.s32 %s26, %s33
      %s40 = sor.u32 %s38, %s39
      %p41 = scmp.eq.s32.totalorder %s40, 0
      %s43 = sadd.s32 %s42, 1
      %s44 = scalar_select %p41, %s42, %s43
      %p47 = pneg %p41
      %p48 = scmp.eq.s32.totalorder %s18, 1
      %p49 = por %p47, %p48
      %p50 = scmp.ne.s32.totalorder %s42, %s45
      %p51 = scmp.eq.s32.totalorder %s18, 0
      %p52 = por %p50, %p51
      %p53 = scmp.ne.s32.totalorder %s42, %s45
      %p54 = scmp.eq.s32.totalorder %s23, 1
      %p55 = por %p53, %p54
      %p56 = scmp.ne.s32.totalorder %s45, %s46
      %p57 = scmp.eq.s32.totalorder %s23, 0
      %p58 = por %p56, %p57
      %p59 = scmp.ne.s32.totalorder %s45, %s46
      %p60 = scmp.eq.s32.totalorder %s24, 1
      %p61 = por %p59, %p60
      %p63 = scmp.ne.s32.totalorder %s46, %s62
      %p64 = scmp.eq.s32.totalorder %s24, 0
      %p65 = por %p63, %p64
      %s66 = sadd.s32 %s26, 1
      %s67 = sadd.s32 %s33, 1
      %s68 = ssub.s32 %s25, %s37
      %s69 = ssub.s32 %s66, %s67
      %s70 = sor.u32 %s68, %s69
      %p71 = scmp.eq.s32.totalorder %s70, 0
      %s73 = sadd.s32 %s72, 1
      %s74 = scalar_select %p71, %s72, %s73
      %p77 = pneg %p71
      %p78 = scmp.eq.s32.totalorder %s18, 1
      %p79 = por %p77, %p78
      %p80 = scmp.ne.s32.totalorder %s72, %s75
      %p81 = scmp.eq.s32.totalorder %s18, 0
      %p82 = por %p80, %p81
      %p83 = scmp.ne.s32.totalorder %s72, %s75
      %p84 = scmp.eq.s32.totalorder %s23, 1
      %p85 = por %p83, %p84
      %p86 = scmp.ne.s32.totalorder %s75, %s76
      %p87 = scmp.eq.s32.totalorder %s23, 0
      %p88 = por %p86, %p87
      %p89 = scmp.ne.s32.totalorder %s75, %s76
      %p90 = scmp.eq.s32.totalorder %s24, 1
      %p91 = por %p89, %p90
      %p93 = scmp.ne.s32.totalorder %s76, %s92
      %p94 = scmp.eq.s32.totalorder %s24, 0
      %p95 = por %p93, %p94
      %s97 = sadd.s32 %s96, 1
      %p100 = scmp.eq.s32.totalorder %s18, 1
      %p101 = scmp.ne.s32.totalorder %s96, %s98
      %p102 = scmp.eq.s32.totalorder %s18, 0
      %p103 = por %p101, %p102
      %p104 = scmp.ne.s32.totalorder %s96, %s98
      %p105 = scmp.eq.s32.totalorder %s23, 1
      %p106 = por %p104, %p105
      %p107 = scmp.ne.s32.totalorder %s98, %s99
      %p108 = scmp.eq.s32.totalorder %s23, 0
      %p109 = por %p107, %p108
      %p110 = scmp.ne.s32.totalorder %s98, %s99
      %p111 = scmp.eq.s32.totalorder %s24, 1
      %p112 = por %p110, %p111
      %p114 = scmp.ne.s32.totalorder %s99, %s113
      %p115 = scmp.eq.s32.totalorder %s24, 0
      %p116 = por %p114, %p115
      %s117 = ssub.s32 %s25, %s37
      %s118 = ssub.s32 %s26, %s33
      %s119 = sor.u32 %s117, %s118
      %p120 = scmp.eq.s32.totalorder %s119, 0
      %s122 = sadd.s32 %s121, 1
      %s123 = scalar_select %p120, %s121, %s122
      %p126 = pneg %p120
      %p127 = scmp.eq.s32.totalorder %s18, 1
      %p128 = por %p126, %p127
      %p129 = scmp.ne.s32.totalorder %s121, %s124
      %p130 = scmp.eq.s32.totalorder %s18, 0
      %p131 = por %p129, %p130
      %p132 = scmp.ne.s32.totalorder %s121, %s124
      %p133 = scmp.eq.s32.totalorder %s23, 1
      %p134 = por %p132, %p133
      %p135 = scmp.ne.s32.totalorder %s124, %s125
      %p136 = scmp.eq.s32.totalorder %s23, 0
      %p137 = por %p135, %p136
      %p138 = scmp.ne.s32.totalorder %s124, %s125
      %p139 = scmp.eq.s32.totalorder %s24, 1
      %p140 = por %p138, %p139
      %p142 = scmp.ne.s32.totalorder %s125, %s141
      %p143 = scmp.eq.s32.totalorder %s24, 0
      %p144 = por %p142, %p143
      %p145 = scmp.le.s32.totalorder 1, %s18
      %p146 = scmp.lt.s32.totalorder %s18, 3
      %p147 = pnand %p145, %p146
      %p148 = pneg %p147
      // Predicated region
      $region9: #{tpu_custom_call.1} parent=5 // pred_check
        _
      $region10: #{tpu_custom_call.1} parent=5 // pred_check_branch
        %150 = sbr.rel (%p147) target = $region12
      $region11: #{tpu_custom_call.1} parent=5 // pred_region
        %s151 = ssub.s32 %s18, 1
        // Predicated region
        $region13: #{tpu_custom_call.1} parent=11 // pred_check
          %p152 = pneg %p109
        $region14: #{tpu_custom_call.1} parent=11 // pred_check_branch
          %154 = sbr.rel (%p152) target = $region16
        $region15: #{tpu_custom_call.1} parent=11 // pred_region
          %s156 = ssub.s32 64, 64
          %157 = vsyncadd [#allocation7], %s156
          %s159 = sshll.u32 [#allocation8], 4
          %s160 = int_to_ptr.vmem [resolvable:$true] %s159
          %162 = dma.hbm_to_vmem [thread:$0]  %s2, 64, %s160, [#allocation7]
        $region16: #{tpu_custom_call.1} parent=11 // pred_fallthru
          _
      $region12: #{tpu_custom_call.1} parent=5 // pred_fallthru
        _
      %p163 = scmp.lt.s32.totalorder %s18, 2
      // Predicated region
      $region17: #{tpu_custom_call.1} parent=5 // pred_check
        %p164 = pneg %p163
      $region18: #{tpu_custom_call.1} parent=5 // pred_check_branch
        %166 = sbr.rel (%p164) target = $region20
      $region19: #{tpu_custom_call.1} parent=5 // pred_region
        // Predicated region
        $region21: #{tpu_custom_call.1} parent=19 // pred_check
          %p167 = pneg %p52
        $region22: #{tpu_custom_call.1} parent=19 // pred_check_branch
          %169 = sbr.rel (%p167) target = $region24
        $region23: #{tpu_custom_call.1} parent=19 // pred_region
          %s170 = sand.u32 %s42, 1
          %s171 = scalar_lea.sflag [#allocation4], %s170
          %s172 = sand.u32 %s42, 1
          %s173 = smul.addr %s172, 12
          %s174 = scalar_lea.vmem [#allocation3], %s173
          %s175 = smul.u32 3, %s26
          %s177 = ssub.s32 192, 192
          %178 = vsyncadd %s171, %s177
          %s179 = smul.addr %s25, 6
          %s180 = sadd.s32 %s175, %s179
          %s181 = smul.addr %s180, 64
          %s182 = scalar_lea.hbm %s0, %s181
          %s184 = sshll.u32 %s174, 4
          %s185 = int_to_ptr.vmem [resolvable:$true] %s184
          %187 = dma.hbm_to_vmem [thread:$0]  %s182, 192, %s185, %s171
        $region24: #{tpu_custom_call.1} parent=19 // pred_fallthru
          _
        // Predicated region
        $region25: #{tpu_custom_call.1} parent=19 // pred_check
          %p188 = pneg %p82
        $region26: #{tpu_custom_call.1} parent=19 // pred_check_branch
          %190 = sbr.rel (%p188) target = $region28
        $region27: #{tpu_custom_call.1} parent=19 // pred_region
          %s191 = sand.u32 %s18, 1
          %s192 = scalar_lea.sflag [#allocation7], %s191
          %s193 = sand.u32 %s72, 1
          %s194 = smul.addr %s193, 12
          %s195 = scalar_lea.vmem [#allocation6], %s194
          %s196 = sadd.s32 %s26, 1
          %s197 = smul.u32 3, %s196
          %s199 = ssub.s32 192, 192
          %200 = vsyncadd %s192, %s199
          %s201 = smul.addr %s25, 6
          %s202 = sadd.s32 %s197, %s201
          %s203 = smul.addr %s202, 64
          %s204 = scalar_lea.hbm %s1, %s203
          %s206 = sshll.u32 %s195, 4
          %s207 = int_to_ptr.vmem [resolvable:$true] %s206
          %209 = dma.hbm_to_vmem [thread:$0]  %s204, 192, %s207, %s192
        $region28: #{tpu_custom_call.1} parent=19 // pred_fallthru
          _
      $region20: #{tpu_custom_call.1} parent=5 // pred_fallthru
        _
      %p210 = scmp.le.s32.totalorder 1, %s18
      %p211 = scmp.lt.s32.totalorder %s18, 3
      %p212 = pnand %p210, %p211
      %p213 = pneg %p212
      // Predicated region
      $region29: #{tpu_custom_call.1} parent=5 // pred_check
        _
      $region30: #{tpu_custom_call.1} parent=5 // pred_check_branch
        %215 = sbr.rel (%p212) target = $region32
      $region31: #{tpu_custom_call.1} parent=5 // pred_region
        %s216 = ssub.s32 %s18, 1
        %s217 = sand.u32 %s45, 1
        %s218 = scalar_lea.sflag [#allocation4], %s217
        %s219 = sand.u32 %s45, 1
        %s220 = smul.addr %s219, 12
        %s221 = scalar_lea.vmem [#allocation3], %s220
        // Predicated region
        $region33: #{tpu_custom_call.1} parent=31 // pred_check
          %p222 = pneg %p58
        $region34: #{tpu_custom_call.1} parent=31 // pred_check_branch
          %224 = sbr.rel (%p222) target = $region36
        $region35: #{tpu_custom_call.1} parent=31 // pred_region
          %225 = dma.done %s218, 192
        $region36: #{tpu_custom_call.1} parent=31 // pred_fallthru
          _
        %s226 = sand.u32 %s23, 1
        %s227 = scalar_lea.sflag [#allocation7], %s226
        %s228 = sand.u32 %s75, 1
        %s229 = smul.addr %s228, 12
        %s230 = scalar_lea.vmem [#allocation6], %s229
        // Predicated region
        $region37: #{tpu_custom_call.1} parent=31 // pred_check
          %p231 = pneg %p88
        $region38: #{tpu_custom_call.1} parent=31 // pred_check_branch
          %233 = sbr.rel (%p231) target = $region40
        $region39: #{tpu_custom_call.1} parent=31 // pred_region
          %234 = dma.done %s227, 192
        $region40: #{tpu_custom_call.1} parent=31 // pred_fallthru
          _
        // Predicated region
        $region41: #{tpu_custom_call.1} parent=31 // pred_check
          %p235 = pneg %p109
        $region42: #{tpu_custom_call.1} parent=31 // pred_check_branch
          %237 = sbr.rel (%p235) target = $region44
        $region43: #{tpu_custom_call.1} parent=31 // pred_region
          %238 = dma.done [#allocation7], 64
        $region44: #{tpu_custom_call.1} parent=31 // pred_fallthru
          _
        %s239 = sand.u32 %s45, 1
        %s240 = scalar_lea.sflag [#allocation4], %s239
        %s241 = sand.u32 %s45, 1
        %s242 = smul.addr %s241, 12
        %s243 = scalar_lea.vmem [#allocation3], %s242
        %p244 = pneg %p58
        %p245 = pneg %p55
        %s246 = sand.u32 %s23, 1
        %s247 = scalar_lea.sflag [#allocation7], %s246
        %s248 = sand.u32 %s75, 1
        %s249 = smul.addr %s248, 12
        %s250 = scalar_lea.vmem [#allocation6], %s249
        %p251 = pneg %p88
        %p252 = pneg %p85
        %p253 = pneg %p109
        %p254 = pneg %p106
        %p255 = pneg %p137
        %p256 = pneg %p134
        %s257 = sand.u32 %s124, 1
        %s258 = scalar_lea.sflag [#allocation5], %s257
        %s259 = sand.u32 %s124, 1
        %s260 = smul.addr %s259, 24
        %s261 = scalar_lea.vmem [#allocation9], %s260
        %s262 = smul.u32 3, %s28
        %s263 = sadd.s32 %s28, 1
        %s264 = smul.u32 3, %s263
        %s265 = smul.u32 3, %s28
        %v267 = vld [vmem:[%s221] sm:$0xff]
        %v268 = vld [vmem:[%s221 + $0x8] sm:$0xf]
        %269 = vst [vmem:[#allocation2] sm:$0xff] %v267
        %270 = vst [vmem:[#allocation2 + $0x8] sm:$0xf] %v268
        %v271 = vld [vmem:[%s221] sm:$0xff]
        %v272 = vld [vmem:[%s221 + $0x8] sm:$0xf]
        %275 = vrot.lane.b32.xlu0 %v271, 127
        %v276 = vpop.permute.xlu0 %275
        %277 = vrot.lane.b32.xlu0 %v272, 127
        %v278 = vpop.permute.xlu0 %277
        %v279 = vrot.slane %v276, 4
        %v280 = vrot.slane %v278, 4
        %vm281 = vcmask 1043456
        %v282 = vsel %vm281, %v279, %v280
        %vm283 = vcmask 1039360
        %v284 = vsel %vm283, %v276, %v282
        %287 = vst [vmem:[#allocation2 + $0xc] sm:$0xff] %v284
        %vm288 = vcmask 1035264
        %289 = vst.msk [vmem:[#allocation2 + $0x14] sm:$0xf] %vm288, %v278
        %v290 = vld [vmem:[%s230] sm:$0xf]
        %292 = vrot.lane.b32.xlu0 %v290, 127
        %v293 = vpop.permute.xlu0 %292
        %vm295 = vcmask 1044472
        %296 = vst.msk [vmem:[#allocation2 + $0x14] sm:$0xf] %vm295, %v293
        %v297 = vld [vmem:[%s221] sm:$0xff]
        %v298 = vld [vmem:[%s221 + $0x8] sm:$0xf]
        %301 = vrot.lane.b32.xlu0 %v297, 126
        %v302 = vpop.permute.xlu0 %301
        %303 = vrot.lane.b32.xlu0 %v298, 126
        %v304 = vpop.permute.xlu0 %303
        %v305 = vrot.slane %v302, 4
        %v306 = vrot.slane %v304, 4
        %v307 = vsel %vm281, %v305, %v306
        %vm308 = vcmask 1031168
        %v309 = vsel %vm308, %v302, %v307
        %312 = vst [vmem:[#allocation2 + $0x18] sm:$0xff] %v309
        %vm313 = vcmask 1027072
        %314 = vst.msk [vmem:[#allocation2 + $0x20] sm:$0xf] %vm313, %v304
        %v315 = vld [vmem:[%s230] sm:$0xf]
        %317 = vrot.lane.b32.xlu0 %v315, 126
        %v318 = vpop.permute.xlu0 %317
        %vm320 = vcmask 1044464
        %321 = vst.msk [vmem:[#allocation2 + $0x20] sm:$0xf] %vm320, %v318
        %v322 = vld [vmem:[%s221] sm:$0xff]
        %v323 = vld [vmem:[%s221 + $0x8] sm:$0xf]
        %326 = vrot.lane.b32.xlu0 %v322, 110
        %v327 = vpop.permute.xlu0 %326
        %328 = vrot.lane.b32.xlu0 %v323, 110
        %v329 = vpop.permute.xlu0 %328
        %v330 = vrot.slane %v327, 4
        %v331 = vrot.slane %v329, 4
        %v332 = vsel %vm281, %v330, %v331
        %vm333 = vcmask 900096
        %v334 = vsel %vm333, %v327, %v332
        %337 = vst [vmem:[#allocation2 + $0x24] sm:$0xff] %v334
        %vm338 = vcmask 896000
        %339 = vst.msk [vmem:[#allocation2 + $0x2c] sm:$0xf] %vm338, %v329
        %v340 = vld [vmem:[%s230] sm:$0xf]
        %342 = vrot.lane.b32.xlu0 %v340, 110
        %v343 = vpop.permute.xlu0 %342
        %vm345 = vcmask 1044336
        %346 = vst.msk [vmem:[#allocation2 + $0x2c] sm:$0xf] %vm345, %v343
        %v347 = vld [vmem:[%s221] sm:$0xff]
        %v348 = vld [vmem:[%s221 + $0x8] sm:$0xf]
        %351 = vrot.lane.b32.xlu0 %v347, 109
        %v352 = vpop.permute.xlu0 %351
        %353 = vrot.lane.b32.xlu0 %v348, 109
        %v354 = vpop.permute.xlu0 %353
        %v355 = vrot.slane %v352, 4
        %v356 = vrot.slane %v354, 4
        %v357 = vsel %vm281, %v355, %v356
        %vm358 = vcmask 891904
        %v359 = vsel %vm358, %v352, %v357
        %362 = vst [vmem:[#allocation2 + $0x30] sm:$0xff] %v359
        %vm363 = vcmask 887808
        %364 = vst.msk [vmem:[#allocation2 + $0x38] sm:$0xf] %vm363, %v354
        %v365 = vld [vmem:[%s230] sm:$0xf]
        %367 = vrot.lane.b32.xlu0 %v365, 109
        %v368 = vpop.permute.xlu0 %367
        %vm370 = vcmask 1044328
        %371 = vst.msk [vmem:[#allocation2 + $0x38] sm:$0xf] %vm370, %v368
        %v372 = vld [vmem:[%s221] sm:$0xff]
        %v373 = vld [vmem:[%s221 + $0x8] sm:$0xf]
        %376 = vrot.lane.b32.xlu0 %v372, 108
        %v377 = vpop.permute.xlu0 %376
        %378 = vrot.lane.b32.xlu0 %v373, 108
        %v379 = vpop.permute.xlu0 %378
        %v380 = vrot.slane %v377, 4
        %v381 = vrot.slane %v379, 4
        %v382 = vsel %vm281, %v380, %v381
        %vm383 = vcmask 883712
        %v384 = vsel %vm383, %v377, %v382
        %387 = vst [vmem:[#allocation2 + $0x3c] sm:$0xff] %v384
        %vm388 = vcmask 879616
        %389 = vst.msk [vmem:[#allocation2 + $0x44] sm:$0xf] %vm388, %v379
        %v390 = vld [vmem:[%s230] sm:$0xf]
        %392 = vrot.lane.b32.xlu0 %v390, 108
        %v393 = vpop.permute.xlu0 %392
        %vm395 = vcmask 1044320
        %396 = vst.msk [vmem:[#allocation2 + $0x44] sm:$0xf] %vm395, %v393
        %v397 = vld [vmem:[%s221] sm:$0xff]
        %v398 = vld [vmem:[%s221 + $0x8] sm:$0xf]
        %401 = vrot.lane.b32.xlu0 %v397, 92
        %v402 = vpop.permute.xlu0 %401
        %403 = vrot.lane.b32.xlu0 %v398, 92
        %v404 = vpop.permute.xlu0 %403
        %v405 = vrot.slane %v402, 4
        %v406 = vrot.slane %v404, 4
        %v407 = vsel %vm281, %v405, %v406
        %vm408 = vcmask 752640
        %v409 = vsel %vm408, %v402, %v407
        %412 = vst [vmem:[#allocation2 + $0x48] sm:$0xff] %v409
        %vm413 = vcmask 748544
        %414 = vst.msk [vmem:[#allocation2 + $0x50] sm:$0xf] %vm413, %v404
        %v415 = vld [vmem:[%s230] sm:$0xf]
        %417 = vrot.lane.b32.xlu0 %v415, 92
        %v418 = vpop.permute.xlu0 %417
        %vm420 = vcmask 1044192
        %421 = vst.msk [vmem:[#allocation2 + $0x50] sm:$0xf] %vm420, %v418
        %v422 = vld [vmem:[%s221] sm:$0xff]
        %v423 = vld [vmem:[%s221 + $0x8] sm:$0xf]
        %426 = vrot.lane.b32.xlu0 %v422, 91
        %v427 = vpop.permute.xlu0 %426
        %428 = vrot.lane.b32.xlu0 %v423, 91
        %v429 = vpop.permute.xlu0 %428
        %v430 = vrot.slane %v427, 4
        %v431 = vrot.slane %v429, 4
        %v432 = vsel %vm281, %v430, %v431
        %vm433 = vcmask 744448
        %v434 = vsel %vm433, %v427, %v432
        %437 = vst [vmem:[#allocation2 + $0x54] sm:$0xff] %v434
        %vm438 = vcmask 740352
        %439 = vst.msk [vmem:[#allocation2 + $0x5c] sm:$0xf] %vm438, %v429
        %v440 = vld [vmem:[%s230] sm:$0xf]
        %442 = vrot.lane.b32.xlu0 %v440, 91
        %v443 = vpop.permute.xlu0 %442
        %vm445 = vcmask 1044184
        %446 = vst.msk [vmem:[#allocation2 + $0x5c] sm:$0xf] %vm445, %v443
        %v447 = vld [vmem:[%s221] sm:$0xff]
        %v448 = vld [vmem:[%s221 + $0x8] sm:$0xf]
        %451 = vrot.lane.b32.xlu0 %v447, 90
        %v452 = vpop.permute.xlu0 %451
        %453 = vrot.lane.b32.xlu0 %v448, 90
        %v454 = vpop.permute.xlu0 %453
        %v455 = vrot.slane %v452, 4
        %v456 = vrot.slane %v454, 4
        %v457 = vsel %vm281, %v455, %v456
        %vm458 = vcmask 736256
        %v459 = vsel %vm458, %v452, %v457
        %462 = vst [vmem:[#allocation2 + $0x60] sm:$0xff] %v459
        %vm463 = vcmask 732160
        %464 = vst.msk [vmem:[#allocation2 + $0x68] sm:$0xf] %vm463, %v454
        %v465 = vld [vmem:[%s230] sm:$0xf]
        %467 = vrot.lane.b32.xlu0 %v465, 90
        %v468 = vpop.permute.xlu0 %467
        %vm470 = vcmask 1044176
        %471 = vst.msk [vmem:[#allocation2 + $0x68] sm:$0xf] %vm470, %v468
        %v472 = vld [vmem:[#allocation8] sm:$0xf]
        %v473 = vld [vmem:[#allocation2] sm:$0xff]
        %v474 = vld [vmem:[#allocation2 + $0x8] sm:$0xf]
        %v475 = vld [vmem:[#allocation2 + $0xc] sm:$0xff]
        %v476 = vld [vmem:[#allocation2 + $0x14] sm:$0xf]
        %v477 = vld [vmem:[#allocation2 + $0x18] sm:$0xff]
        %v478 = vld [vmem:[#allocation2 + $0x20] sm:$0xf]
        %v479 = vld [vmem:[#allocation2 + $0x24] sm:$0xff]
        %v480 = vld [vmem:[#allocation2 + $0x2c] sm:$0xf]
        %v481 = vld [vmem:[#allocation2 + $0x30] sm:$0xff]
        %v482 = vld [vmem:[#allocation2 + $0x38] sm:$0xf]
        %v483 = vld [vmem:[#allocation2 + $0x3c] sm:$0xff]
        %v484 = vld [vmem:[#allocation2 + $0x44] sm:$0xf]
        %v485 = vld [vmem:[#allocation2 + $0x48] sm:$0xff]
        %v486 = vld [vmem:[#allocation2 + $0x50] sm:$0xf]
        %v487 = vld [vmem:[#allocation2 + $0x54] sm:$0xff]
        %v488 = vld [vmem:[#allocation2 + $0x5c] sm:$0xf]
        %v489 = vld [vmem:[#allocation2 + $0x60] sm:$0xff]
        %v490 = vld [vmem:[#allocation2 + $0x68] sm:$0xf]
        %v509 = vunpack.c.l.b16 %v473
        %v510 = vunpack.c.h.b16 %v473
        %v511 = vunpack.c.l.b16 %v474
        %v512 = vunpack.c.l.b16 %v475
        %v513 = vunpack.c.h.b16 %v475
        %v514 = vunpack.c.l.b16 %v476
        %v515 = vunpack.c.l.b16 %v477
        %v516 = vunpack.c.h.b16 %v477
        %v517 = vunpack.c.l.b16 %v478
        %v518 = vunpack.c.l.b16 %v479
        %v519 = vunpack.c.h.b16 %v479
        %v520 = vunpack.c.l.b16 %v480
        %v521 = vunpack.c.l.b16 %v481
        %v522 = vunpack.c.h.b16 %v481
        %v523 = vunpack.c.l.b16 %v482
        %v524 = vunpack.c.l.b16 %v483
        %v525 = vunpack.c.h.b16 %v483
        %v526 = vunpack.c.l.b16 %v484
        %v527 = vunpack.c.l.b16 %v485
        %v528 = vunpack.c.h.b16 %v485
        %v529 = vunpack.c.l.b16 %v486
        %v530 = vunpack.c.l.b16 %v487
        %v531 = vunpack.c.h.b16 %v487
        %v532 = vunpack.c.l.b16 %v488
        %v533 = vunpack.c.l.b16 %v489
        %v534 = vunpack.c.h.b16 %v489
        %v535 = vunpack.c.l.b16 %v490
        %v536 = vpack.c.b16 %v512, %v509
        %v537 = vpack.c.b16 %v513, %v510
        %v538 = vpack.c.b16 %v514, %v511
        %v539 = vpack.c.b16 %v518, %v515
        %v540 = vpack.c.b16 %v519, %v516
        %v541 = vpack.c.b16 %v520, %v517
        %v542 = vpack.c.b16 %v524, %v521
        %v543 = vpack.c.b16 %v525, %v522
        %v544 = vpack.c.b16 %v526, %v523
        %v545 = vpack.c.b16 %v530, %v527
        %v546 = vpack.c.b16 %v531, %v528
        %v547 = vpack.c.b16 %v532, %v529
        %v548 = vpack.c.b16 %v533, %v533
        %v549 = vpack.c.b16 %v534, %v534
        %v550 = vpack.c.b16 %v535, %v535
        %vm563 = vcmask 588800
        %v565 = vsel %vm563, %v472, 0
        %vm567 = vcmask 1043456
        %v569 = vsel %vm567, %v548, 0
        %v572 = vsel %vm567, %v549, 0
        %v575 = vsel %vm567, %v550, 0
        %577 = vmatprep.subr.bf16.mxu0 0
        %578 = vmatpush1.bf16.msra.mxu0 0
        %579 = vmatprep.subr.bf16.mxu0 0
        %580 = vmatpush1.bf16.msra.mxu0 0
        %581 = vmatprep.subr.bf16.mxu0 0
        %582 = vmatpush1.bf16.msra.mxu0 0
        %583 = vmatprep.subr.bf16.mxu0 %v572
        %584 = vmatpush1.bf16.msra.mxu0 %v569
        %585 = vmatprep.subr.bf16.mxu0 %v546
        %586 = vmatpush1.bf16.msra.mxu0 %v545
        %587 = vmatprep.subr.bf16.mxu0 %v543
        %588 = vmatpush1.bf16.msra.mxu0 %v542
        %589 = vmatprep.subr.bf16.mxu0 %v540
        %590 = vmatpush1.bf16.msra.mxu0 %v539
        %591 = vmatprep.subr.bf16.mxu0 %v537
        %592 = vmatpush1.bf16.msra.mxu0 %v536
        %593 = vmatprep.subr.bf16.mxu0 0
        %594 = vmatpush2.bf16.msra.mxu0 0
        %595 = vmatprep.subr.bf16.mxu0 0
        %596 = vmatpush2.bf16.msra.mxu0 0
        %597 = vmatprep.subr.bf16.mxu0 0
        %598 = vmatpush2.bf16.msra.mxu0 0
        %599 = vmatprep.subr.bf16.mxu0 0
        %600 = vmatpush2.bf16.msra.mxu0 0
        %601 = vmatprep.subr.bf16.mxu0 0
        %602 = vmatpush2.bf16.msra.mxu0 0
        %603 = vmatprep.subr.bf16.mxu0 0
        %604 = vmatpush2.bf16.msra.mxu0 0
        %605 = vmatprep.subr.bf16.mxu0 0
        %606 = vmatpush2.bf16.msra.mxu0 0
        %607 = vmatprep.subr.bf16.mxu0 0
        %608 = vmatpush2.bf16.msra.mxu0 0
        %609 = vmatprep.mubr.bf16.mxu0 0
        %610 = vmatmul.mubr.bf16.gmra.mxu0 %v565
        %v611 = vpop.f32.mrf.mxu0
        %v612 = vadd.f32 0.0, %v611
        %v613 = vpop.f32.mrf.mxu0
        %v614 = vadd.f32 0.0, %v613
        %v615 = vpop.f32.mrf.mxu0
        %v616 = vpop.f32.mrf.mxu0
        %617 = vdwg.mxu0
        %618 = vmatprep.subr.bf16.mxu0 0
        %619 = vmatpush1.bf16.msra.mxu0 0
        %620 = vmatprep.subr.bf16.mxu0 0
        %621 = vmatpush1.bf16.msra.mxu0 0
        %622 = vmatprep.subr.bf16.mxu0 0
        %623 = vmatpush1.bf16.msra.mxu0 0
        %624 = vmatprep.subr.bf16.mxu0 0
        %625 = vmatpush1.bf16.msra.mxu0 %v575
        %626 = vmatprep.subr.bf16.mxu0 0
        %627 = vmatpush1.bf16.msra.mxu0 %v547
        %628 = vmatprep.subr.bf16.mxu0 0
        %629 = vmatpush1.bf16.msra.mxu0 %v544
        %630 = vmatprep.subr.bf16.mxu0 0
        %631 = vmatpush1.bf16.msra.mxu0 %v541
        %632 = vmatprep.subr.bf16.mxu0 0
        %633 = vmatpush1.bf16.msra.mxu0 %v538
        %634 = vmatprep.subr.bf16.mxu0 0
        %635 = vmatpush2.bf16.msra.mxu0 0
        %636 = vmatprep.subr.bf16.mxu0 0
        %637 = vmatpush2.bf16.msra.mxu0 0
        %638 = vmatprep.subr.bf16.mxu0 0
        %639 = vmatpush2.bf16.msra.mxu0 0
        %640 = vmatprep.subr.bf16.mxu0 0
        %641 = vmatpush2.bf16.msra.mxu0 0
        %642 = vmatprep.subr.bf16.mxu0 0
        %643 = vmatpush2.bf16.msra.mxu0 0
        %644 = vmatprep.subr.bf16.mxu0 0
        %645 = vmatpush2.bf16.msra.mxu0 0
        %646 = vmatprep.subr.bf16.mxu0 0
        %647 = vmatpush2.bf16.msra.mxu0 0
        %648 = vmatprep.subr.bf16.mxu0 0
        %649 = vmatpush2.bf16.msra.mxu0 0
        %650 = vmatprep.mubr.bf16.mxu0 0
        %651 = vmatmul.mubr.bf16.gmra.mxu0 %v565
        %v652 = vpop.f32.mrf.mxu0
        %v653 = vadd.f32 0.0, %v652
        %v654 = vpop.f32.mrf.mxu0
        %v655 = vpop.f32.mrf.mxu0
        %v656 = vpop.f32.mrf.mxu0
        %657 = vdwg.mxu0
        %658 = vst [vmem:[%s261] sm:$0xff] %v612
        %659 = vst [vmem:[%s261 + $0x8] sm:$0xff] %v614
        %660 = vst [vmem:[%s261 + $0x10] sm:$0xff] %v653
        %s661 = sand.u32 %s124, 1
        %s662 = scalar_lea.sflag [#allocation5], %s661
        %s663 = sand.u32 %s124, 1
        %s664 = smul.addr %s663, 24
        %s665 = scalar_lea.vmem [#allocation9], %s664
        // Predicated region
        $region45: #{tpu_custom_call.1} parent=31 // pred_check
          %p666 = pneg %p134
        $region46: #{tpu_custom_call.1} parent=31 // pred_check_branch
          %668 = sbr.rel (%p666) target = $region48
        $region47: #{tpu_custom_call.1} parent=31 // pred_region
          %s669 = smul.u32 3, %s28
          %s671 = ssub.s32 384, 384
          %672 = vsyncadd %s662, %s671
          %s673 = smul.addr %s27, 3
          %s674 = sadd.s32 %s669, %s673
          %s675 = smul.addr %s674, 128
          %s676 = scalar_lea.hbm %s3, %s675
          %s678 = sshll.u32 %s665, 4
          %s679 = int_to_ptr.vmem [resolvable:$true] %s678
          %681 = dma.vmem_to_hbm [thread:$0]  %s679, 384, %s676, %s662
        $region48: #{tpu_custom_call.1} parent=31 // pred_fallthru
          _
      $region32: #{tpu_custom_call.1} parent=5 // pred_fallthru
        _
      %p682 = scmp.le.s32.totalorder 2, %s18
      // Predicated region
      $region49: #{tpu_custom_call.1} parent=5 // pred_check
        %p683 = pneg %p682
      $region50: #{tpu_custom_call.1} parent=5 // pred_check_branch
        %685 = sbr.rel (%p683) target = $region52
      $region51: #{tpu_custom_call.1} parent=5 // pred_region
        %s686 = ssub.s32 %s18, 2
        // Predicated region
        $region53: #{tpu_custom_call.1} parent=51 // pred_check
          %p687 = pneg %p140
        $region54: #{tpu_custom_call.1} parent=51 // pred_check_branch
          %689 = sbr.rel (%p687) target = $region56
        $region55: #{tpu_custom_call.1} parent=51 // pred_region
          %s690 = sand.u32 %s125, 1
          %s691 = scalar_lea.sflag [#allocation5], %s690
          %s692 = sand.u32 %s125, 1
          %s693 = smul.addr %s692, 24
          %s694 = scalar_lea.vmem [#allocation9], %s693
          %695 = dma.done %s691, 384
        $region56: #{tpu_custom_call.1} parent=51 // pred_fallthru
          _
      $region52: #{tpu_custom_call.1} parent=5 // pred_fallthru
        _
    $region6: #{tpu_custom_call.1} parent=1 // loop_footer
      %s22 = sadd.s32 1, %s18
    $region7: #{tpu_custom_call.1} parent=1 // loop_footer_branch
      %17 = sbr.rel target = $region3
    $region8: #{tpu_custom_call.1} parent=1 // loop_exit
      _
    %696 = vsyncpa [#allocation4], 1
    %s697 = scalar_lea.sflag [#allocation4], 1
    %698 = vsyncpa %s697, 1
    %699 = vsyncpa [#allocation7], 1
    %s700 = scalar_lea.sflag [#allocation7], 1
    %701 = vsyncpa %s700, 1
    %702 = vsyncpa [#allocation5], 1
    %s703 = scalar_lea.sflag [#allocation5], 1
    %704 = vsyncpa %s703, 1

</llo_original>
